<compile_context>
chip_gen: v7x
topology: tpu7x:2x2x1
jax: 0.10.0
libtpu: 0.0.40
codegen_flags: <defaults>
</compile_context>

<pallas_src>
import math

import jax
import jax.numpy as jnp
from jax.experimental import pallas as pl
from jax.experimental.pallas import tpu as pltpu


def _fnet_embed_kernel(x_ref, w_ref, b_ref, pe_ref, o_ref):
    # x_ref : (Bblk, tl, c_in)   batch-block of sequence tiles
    # w_ref : (c_in, d_model)    conv weight (pre-transposed), VMEM-resident
    # b_ref : (1, d_model)       conv bias (f32), VMEM-resident
    # pe_ref: (tl, d_model)      positional-embedding tile (refetched per L-tile only)
    # o_ref : (Bblk, tl, d_model)
    pe_b = pe_ref[...].astype(jnp.float32) + b_ref[...].astype(jnp.float32)  # hoisted
    w = w_ref[...]
    for i in range(x_ref.shape[0]):        # small static unroll over the batch block
        y = jnp.dot(x_ref[i], w, preferred_element_type=jnp.float32)
        o_ref[i] = (y + pe_b).astype(o_ref.dtype)


def prepare_fnet_params(weight, bias, pe, *, bf16_storage=False):
    """One-time parameter prep (do at module init, NOT per forward call).

    weight: (d_model, c_in) Conv1d(k=1) weight; bias: (d_model,); pe: (max_len, d_model).
    bf16_storage=True stores weight / pe (and the kernel output) in bfloat16,
    halving HBM traffic of this memory-bound kernel on every TPU generation
    (v5e benefits most).  Matmul accumulation stays f32.
    """
    store = jnp.bfloat16 if bf16_storage else jnp.asarray(weight).dtype
    w_t = jnp.asarray(weight).T.astype(store)                 # (c_in, d_model)
    bias2d = jnp.asarray(bias).reshape(1, -1).astype(jnp.float32)  # (1, d_model)
    pe_s = jnp.asarray(pe).astype(store)                      # (max_len, d_model)
    return w_t, bias2d, pe_s


def fnet_embedding(x, w_t, bias2d, pe, *, seq_tile=1024, batch_block_cap=8,
                   vmem_limit_bytes=48 * 1024 * 1024):
    """Fused TokenEmbedding(Conv1d k=1) + PositionalEmbedding forward.

    x: (B, L, c_in); params from prepare_fnet_params().
    Returns (B, L, d_model) in the storage dtype of w_t (f32 or bf16).
    """
    B, L, c_in = x.shape
    c_in_w, d_model = w_t.shape
    assert c_in == c_in_w, "channel mismatch between x and weight"
    assert L <= pe.shape[0], "sequence length exceeds positional-embedding max_len"

    store_dtype = w_t.dtype
    x_itemsize = jnp.dtype(x.dtype).itemsize
    s_itemsize = jnp.dtype(store_dtype).itemsize

    # --- tile sizing (rows per grid step) ---------------------------------
    # The pipeliner double-buffers each stream; per row of a step:
    #   out: d_model*s   pe: d_model*s   x: lane-padded to >=128 lanes.
    per_row = 2 * (2 * d_model * s_itemsize + max(c_in, 128) * x_itemsize)
    rows_cap = max(8, (int(vmem_limit_bytes * 0.6) // per_row) // 8 * 8)
    target_rows = max(8, min(seq_tile, rows_cap))

    if L >= target_rows:
        tl = (target_rows // 8) * 8
        bblk = 1
    else:
        tl = L
        bblk = min(B, max(1, target_rows // max(L, 1)), batch_block_cap)

    num_l = pl.cdiv(L, tl)
    num_b = pl.cdiv(B, bblk)

    # pe tile's second-to-last block dim must be a multiple of 8 or the full
    # extent; slice once only when L is a small ragged length (tiny copy).
    pe_in = pe if tl % 8 == 0 else pe[:L]

    out = pl.pallas_call(
        _fnet_embed_kernel,
        out_shape=jax.ShapeDtypeStruct((B, L, d_model), store_dtype),
        grid=(num_l, num_b),   # batch innermost: pe/weight/bias blocks stay resident
        in_specs=[
            pl.BlockSpec((bblk, tl, c_in), lambda l, b: (b, l, 0)),
            pl.BlockSpec((c_in, d_model), lambda l, b: (0, 0)),
            pl.BlockSpec((1, d_model), lambda l, b: (0, 0)),
            pl.BlockSpec((tl, d_model), lambda l, b: (l, 0)),
        ],
        out_specs=pl.BlockSpec((bblk, tl, d_model), lambda l, b: (b, l, 0)),
        compiler_params=pltpu.CompilerParams(
            dimension_semantics=("parallel", "parallel"),
            vmem_limit_bytes=vmem_limit_bytes,
        ),
    )(x, w_t, bias2d, pe_in)
    return out


def make_positional_embedding(d_model, max_len=5000):
    position = jnp.arange(0, max_len, dtype=jnp.float32)[:, None]          # (max_len, 1)
    div_term = jnp.exp(jnp.arange(0, d_model, 2, dtype=jnp.float32)
                       * -(math.log(10000.0) / d_model))                   # (d_model//2,)
    pe = jnp.zeros((max_len, d_model), dtype=jnp.float32)
    pe = pe.at[:, 0::2].set(jnp.sin(position * div_term))
    pe = pe.at[:, 1::2].set(jnp.cos(position * div_term))
    return pe


def init_token_conv_params(key, c_in, d_model):
    # Conv1d(c_in, d_model, kernel_size=1) weight: (d_model, c_in, 1) -> (d_model, c_in)
    # kaiming_normal_(mode='fan_in', nonlinearity='leaky_relu'): std = gain/sqrt(fan_in),
    # gain = sqrt(2/(1 + a^2)) with default a=0.01, fan_in = c_in * kernel_size = c_in.
    kw, kb = jax.random.split(key)
    gain = math.sqrt(2.0 / (1.0 + 0.01 ** 2))
    std = gain / math.sqrt(c_in)
    weight = std * jax.random.normal(kw, (d_model, c_in), dtype=jnp.float32)
    # default Conv1d bias init: U(-1/sqrt(fan_in), 1/sqrt(fan_in))
    bound = 1.0 / math.sqrt(c_in)
    bias = jax.random.uniform(kb, (d_model,), minval=-bound, maxval=bound,
                              dtype=jnp.float32)
    return weight, bias


if __name__ == "__main__":
    key = jax.random.PRNGKey(0)
    k_x, k_p = jax.random.split(key)

    B, L, c_in, d_model = 2, 8, 4, 32
    x = jax.random.normal(k_x, (B, L, c_in), dtype=jnp.float32)

    weight, bias = init_token_conv_params(k_p, c_in, d_model)
    pe = make_positional_embedding(d_model, max_len=5000)

    ref = (jnp.einsum("blc,dc->bld", x, weight)
           + bias[None, None, :] + pe[None, :L, :])

    # f32 path (matches PyTorch forward semantics).
    w_t, b2, pe_s = prepare_fnet_params(weight, bias, pe)
    out = jax.block_until_ready(fnet_embedding(x, w_t, b2, pe_s))
    assert out.shape == (B, L, d_model)
    assert out.dtype == jnp.float32
    assert jnp.allclose(out, ref, atol=1e-5, rtol=1e-5)

    # bf16-storage path (bandwidth saver on all generations); loose tolerance vs f32 ref.
    w_tb, b2b, pe_b = prepare_fnet_params(weight, bias, pe, bf16_storage=True)
    out_bf16 = jax.block_until_ready(fnet_embedding(x, w_tb, b2b, pe_b))
    assert out_bf16.shape == (B, L, d_model)
    assert out_bf16.dtype == jnp.bfloat16
    assert jnp.allclose(out_bf16.astype(jnp.float32), ref, atol=5e-2, rtol=5e-2)

    print("KERNEL_OK")
</pallas_src>

<mosaic_0001>
module attributes {stable_mosaic.version = 11 : i64} {
  func.func @_fnet_embed_kernel(%arg0: i32, %arg1: i32, %arg2: memref<2x8x4xf32, #tpu.memory_space<vmem>>, %arg3: memref<4x32xf32, #tpu.memory_space<vmem>>, %arg4: memref<1x32xf32, #tpu.memory_space<vmem>>, %arg5: memref<8x32xf32, #tpu.memory_space<vmem>>, %arg6: memref<2x8x32xf32, #tpu.memory_space<vmem>>) attributes {dimension_semantics = [#tpu.dimension_semantics<parallel>, #tpu.dimension_semantics<parallel>], iteration_bounds = array<i64: 1, 1>, scalar_prefetch = 0 : i64, scratch_operands = 0 : i64, tpu.core_type = #tpu.core_type<tc>, window_params = [{transform_indices = @transform_0, window_bounds = array<i64: 2, 8, 4>}, {pipeline_mode = #tpu.pipeline_mode<synchronous>, transform_indices = @transform_1, window_bounds = array<i64: 4, 32>}, {pipeline_mode = #tpu.pipeline_mode<synchronous>, transform_indices = @transform_2, window_bounds = array<i64: 1, 32>}, {transform_indices = @transform_3, window_bounds = array<i64: 8, 32>}, {transform_indices = @transform_4, window_bounds = array<i64: 2, 8, 32>}]} {
    %c0 = arith.constant 0 : index
    %c0_0 = arith.constant 0 : index
    %0 = vector.load %arg5[%c0, %c0_0] : memref<8x32xf32, #tpu.memory_space<vmem>>, vector<8x32xf32>
    %c0_1 = arith.constant 0 : index
    %c0_2 = arith.constant 0 : index
    %1 = vector.load %arg4[%c0_1, %c0_2] : memref<1x32xf32, #tpu.memory_space<vmem>>, vector<1x32xf32>
    %2 = vector.broadcast %1 : vector<1x32xf32> to vector<8x32xf32>
    %3 = arith.addf %0, %2 : vector<8x32xf32>
    %c0_3 = arith.constant 0 : index
    %c0_4 = arith.constant 0 : index
    %4 = vector.load %arg3[%c0_3, %c0_4] : memref<4x32xf32, #tpu.memory_space<vmem>>, vector<4x32xf32>
    %c0_5 = arith.constant 0 : index
    %c0_6 = arith.constant 0 : index
    %c0_7 = arith.constant 0 : index
    %5 = vector.load %arg2[%c0_5, %c0_6, %c0_7] : memref<2x8x4xf32, #tpu.memory_space<vmem>>, vector<1x8x4xf32>
    %6 = vector.shape_cast %5 : vector<1x8x4xf32> to vector<8x4xf32>
    %cst = arith.constant dense<0.000000e+00> : vector<8x32xf32>
    %7 = tpu.matmul %6, %4, %cst {dimension_numbers = #tpu.dot_dimension_numbers<[1], [0], [0], [1], [0, 0, 1, 1], [], []>} : vector<8x4xf32>, vector<4x32xf32>, vector<8x32xf32> -> vector<8x32xf32>
    %8 = arith.addf %7, %3 : vector<8x32xf32>
    %c0_8 = arith.constant 0 : index
    %c0_9 = arith.constant 0 : index
    %c0_10 = arith.constant 0 : index
    %9 = vector.load %arg6[%c0_8, %c0_9, %c0_10] : memref<2x8x32xf32, #tpu.memory_space<vmem>>, vector<1x8x32xf32>
    %10 = vector.shape_cast %9 : vector<1x8x32xf32> to vector<8x32xf32>
    %11 = vector.shape_cast %8 : vector<8x32xf32> to vector<1x8x32xf32>
    tpu.vector_store %arg6[%c0_8, %c0_9, %c0_10], %11 {strides = array<i32>} : memref<2x8x32xf32, #tpu.memory_space<vmem>>, vector<1x8x32xf32>,
    %c1 = arith.constant 1 : index
    %c0_11 = arith.constant 0 : index
    %c0_12 = arith.constant 0 : index
    %12 = vector.load %arg2[%c1, %c0_11, %c0_12] : memref<2x8x4xf32, #tpu.memory_space<vmem>>, vector<1x8x4xf32>
    %13 = vector.shape_cast %12 : vector<1x8x4xf32> to vector<8x4xf32>
    %cst_13 = arith.constant dense<0.000000e+00> : vector<8x32xf32>
    %14 = tpu.matmul %13, %4, %cst_13 {dimension_numbers = #tpu.dot_dimension_numbers<[1], [0], [0], [1], [0, 0, 1, 1], [], []>} : vector<8x4xf32>, vector<4x32xf32>, vector<8x32xf32> -> vector<8x32xf32>
    %15 = arith.addf %14, %3 : vector<8x32xf32>
    %c1_14 = arith.constant 1 : index
    %c0_15 = arith.constant 0 : index
    %c0_16 = arith.constant 0 : index
    %16 = vector.load %arg6[%c1_14, %c0_15, %c0_16] : memref<2x8x32xf32, #tpu.memory_space<vmem>>, vector<1x8x32xf32>
    %17 = vector.shape_cast %16 : vector<1x8x32xf32> to vector<8x32xf32>
    %18 = vector.shape_cast %15 : vector<8x32xf32> to vector<1x8x32xf32>
    tpu.vector_store %arg6[%c1_14, %c0_15, %c0_16], %18 {strides = array<i32>} : memref<2x8x32xf32, #tpu.memory_space<vmem>>, vector<1x8x32xf32>,
    return
  }
  func.func @transform_0(%arg0: i32, %arg1: i32) -> (i32, i32, i32) {
    %c0_i32 = arith.constant 0 : i32
    %c0_i32_0 = arith.constant 0 : i32
    return %arg1, %arg0, %c0_i32 : i32, i32, i32
  }
  func.func @transform_1(%arg0: i32, %arg1: i32) -> (i32, i32) {
    %c0_i32 = arith.constant 0 : i32
    %c0_i32_0 = arith.constant 0 : i32
    %c0_i32_1 = arith.constant 0 : i32
    return %c0_i32, %c0_i32_0 : i32, i32
  }
  func.func @transform_2(%arg0: i32, %arg1: i32) -> (i32, i32) {
    %c0_i32 = arith.constant 0 : i32
    %c0_i32_0 = arith.constant 0 : i32
    %c0_i32_1 = arith.constant 0 : i32
    return %c0_i32, %c0_i32_0 : i32, i32
  }
  func.func @transform_3(%arg0: i32, %arg1: i32) -> (i32, i32) {
    %c0_i32 = arith.constant 0 : i32
    %c0_i32_0 = arith.constant 0 : i32
    return %arg0, %c0_i32 : i32, i32
  }
  func.func @transform_4(%arg0: i32, %arg1: i32) -> (i32, i32, i32) {
    %c0_i32 = arith.constant 0 : i32
    %c0_i32_0 = arith.constant 0 : i32
    return %arg1, %arg0, %c0_i32 : i32, i32, i32
  }
}

</mosaic_0001>

<llo_original>
// kernel: tpu_custom_call.1
$region0: #{tpu_custom_call.1}
  #allocation0 [shape = 'u32[]', space=smem, size = 0x4, offset = 0x4, fixed_abs, tag = 'smem constant byte address 0x4 - core index']
  #allocation1 [shape = 'u32[144,128]{1,0:T(1,128)}', space=vmem, size = 0x12000, scoped, tag = 'internal scratch']
  %s0 = inlined_call_operand.vmem [shape: f32[2,8,4], index: 0, kind: input, shape index: {}]
  %s1 = inlined_call_operand.vmem [shape: f32[4,32], index: 1, kind: input, shape index: {}]
  %s2 = inlined_call_operand.vmem [shape: f32[1,32], index: 2, kind: input, shape index: {}]
  %s3 = inlined_call_operand.vmem [shape: f32[5000,32], index: 3, kind: input, shape index: {}]
  %s4 = inlined_call_operand.hbm [shape: f32[2,8,32], index: 4, kind: output, shape index: {}]
  %s5 = sld [smem:[#allocation0]]
  $region26: #{tpu_custom_call.1} parent=0
    _
  %s7 = ssub.s32 1, %s5
  %s8 = scalar_select 0, %s7, %s5
  $region1: #{tpu_custom_call.1} parent=0
    #allocation2 [shape = 'u8[8192]{0}', space=vmem, size = 0x2000, scoped, tag = 'output window, operand 0, single buffered']
    #allocation3 [shape = 's32[1]{0}', space=sflag, size = 0x4, scoped, tag = 'scoped memory for tpu_custom_call.1']
    %9 = vsyncpa [#allocation3], 0
    // Predicated region
    $region2: #{tpu_custom_call.1} parent=1 // pred_check
      _
    $region3: #{tpu_custom_call.1} parent=1 // pred_check_branch
      %11 = sbr.rel (0) target = $region5
    $region4: #{tpu_custom_call.1} parent=1 // pred_region
      _
    $region5: #{tpu_custom_call.1} parent=1 // pred_fallthru
      _
    // Predicated region
    $region6: #{tpu_custom_call.1} parent=1 // pred_check
      _
    $region7: #{tpu_custom_call.1} parent=1 // pred_check_branch
      %13 = sbr.rel (0) target = $region9
    $region8: #{tpu_custom_call.1} parent=1 // pred_region
      _
    $region9: #{tpu_custom_call.1} parent=1 // pred_fallthru
      _
    // Predicated region
    $region10: #{tpu_custom_call.1} parent=1 // pred_check
      _
    $region11: #{tpu_custom_call.1} parent=1 // pred_check_branch
      %15 = sbr.rel (0) target = $region13
    $region12: #{tpu_custom_call.1} parent=1 // pred_region
      _
    $region13: #{tpu_custom_call.1} parent=1 // pred_fallthru
      _
    // Predicated region
    $region14: #{tpu_custom_call.1} parent=1 // pred_check
      _
    $region15: #{tpu_custom_call.1} parent=1 // pred_check_branch
      %17 = sbr.rel (0) target = $region17
    $region16: #{tpu_custom_call.1} parent=1 // pred_region
      _
    $region17: #{tpu_custom_call.1} parent=1 // pred_fallthru
      _
    %v18 = vld [vmem:[%s3] sm:$0xff]
    %v19 = vld [vmem:[%s2] sm:$0x1]
    %v21 = vlaneseq
    %v22 = vshrl.u32 %v21, 7
    %v23 = vsub.s32 0, %v22
    %v24 = vrot.slane %v19, %v23
    %v26 = vadd.f32 %v18, %v24
    %v27 = vld [vmem:[%s1] sm:$0xf]
    %v28 = vld [vmem:[%s0] sm:$0xff]
    %vm29 = vcmask 31744
    %v31 = vsel %vm29, %v28, 0
    %vm33 = vcmask 1043456
    %v35 = vsel %vm33, %v27, 0
    %37 = vmatprep.subr.mxu0 0.0
    %38 = vmatpush1.msra.mxu0 %v35
    %39 = vmatprep.subr.mxu0 0.0
    %40 = vmatpush1.msra.mxu0 0.0
    %41 = vmatprep.subr.mxu0 0.0
    %42 = vmatpush1.msra.mxu0 0.0
    %43 = vmatprep.subr.mxu0 0.0
    %44 = vmatpush1.msra.mxu0 0.0
    %45 = vmatprep.subr.mxu0 0.0
    %46 = vmatpush1.msra.mxu0 0.0
    %47 = vmatprep.subr.mxu0 0.0
    %48 = vmatpush1.msra.mxu0 0.0
    %49 = vmatprep.subr.mxu0 0.0
    %50 = vmatpush1.msra.mxu0 0.0
    %51 = vmatprep.subr.mxu0 0.0
    %52 = vmatpush1.msra.mxu0 0.0
    %53 = vmatprep.subr.mxu0 0.0
    %54 = vmatpush1.msra.mxu0 0.0
    %55 = vmatprep.subr.mxu0 0.0
    %56 = vmatpush1.msra.mxu0 0.0
    %57 = vmatprep.subr.mxu0 0.0
    %58 = vmatpush1.msra.mxu0 0.0
    %59 = vmatprep.subr.mxu0 0.0
    %60 = vmatpush1.msra.mxu0 0.0
    %61 = vmatprep.subr.mxu0 0.0
    %62 = vmatpush1.msra.mxu0 0.0
    %63 = vmatprep.subr.mxu0 0.0
    %64 = vmatpush1.msra.mxu0 0.0
    %65 = vmatprep.subr.mxu0 0.0
    %66 = vmatpush1.msra.mxu0 0.0
    %67 = vmatprep.subr.mxu0 0.0
    %68 = vmatpush1.msra.mxu0 0.0
    %69 = vmatprep.subr.mxu0 0.0
    %70 = vmatpush1.msra.mxu0 0.0
    %71 = vmatprep.subr.mxu0 0.0
    %72 = vmatpush1.msra.mxu0 0.0
    %73 = vmatprep.subr.mxu0 0.0
    %74 = vmatpush1.msra.mxu0 0.0
    %75 = vmatprep.subr.mxu0 0.0
    %76 = vmatpush1.msra.mxu0 0.0
    %77 = vmatprep.subr.mxu0 0.0
    %78 = vmatpush1.msra.mxu0 0.0
    %79 = vmatprep.subr.mxu0 0.0
    %80 = vmatpush1.msra.mxu0 0.0
    %81 = vmatprep.subr.mxu0 0.0
    %82 = vmatpush1.msra.mxu0 0.0
    %83 = vmatprep.subr.mxu0 0.0
    %84 = vmatpush1.msra.mxu0 0.0
    %85 = vmatprep.subr.mxu0 0.0
    %86 = vmatpush1.msra.mxu0 0.0
    %87 = vmatprep.subr.mxu0 0.0
    %88 = vmatpush1.msra.mxu0 0.0
    %89 = vmatprep.subr.mxu0 0.0
    %90 = vmatpush1.msra.mxu0 0.0
    %91 = vmatprep.subr.mxu0 0.0
    %92 = vmatpush1.msra.mxu0 0.0
    %93 = vmatprep.subr.mxu0 0.0
    %94 = vmatpush1.msra.mxu0 0.0
    %95 = vmatprep.subr.mxu0 0.0
    %96 = vmatpush1.msra.mxu0 0.0
    %97 = vmatprep.subr.mxu0 0.0
    %98 = vmatpush1.msra.mxu0 0.0
    %99 = vmatprep.subr.mxu0 0.0
    %100 = vmatpush1.msra.mxu0 0.0
    %101 = vmatprep.mubr.f32.mxu0 0.0
    %102 = vmatmul.mubr.f32.gmra.mrb[0].mxu0 %v31
    %v103 = vpop.f32.mrb[0].mxu0
    %v104 = vadd.f32 %v26, %v103
    %v105 = vpop.f32.mrb[0].mxu0
    %106 = vdwg.mxu0
    %vm107 = vcmask 261120
    %108 = vst.msk [vmem:[#allocation2] sm:$0xff] %vm107, %v104
    %s109 = scalar_lea.vmem %s0, 8
    %v110 = vld [vmem:[%s109] sm:$0xff]
    %v112 = vsel %vm29, %v110, 0
    %114 = vmatprep.subr.mxu0 0.0
    %115 = vmatpush1.msra.mxu0 %v35
    %116 = vmatprep.subr.mxu0 0.0
    %117 = vmatpush1.msra.mxu0 0.0
    %118 = vmatprep.subr.mxu0 0.0
    %119 = vmatpush1.msra.mxu0 0.0
    %120 = vmatprep.subr.mxu0 0.0
    %121 = vmatpush1.msra.mxu0 0.0
    %122 = vmatprep.subr.mxu0 0.0
    %123 = vmatpush1.msra.mxu0 0.0
    %124 = vmatprep.subr.mxu0 0.0
    %125 = vmatpush1.msra.mxu0 0.0
    %126 = vmatprep.subr.mxu0 0.0
    %127 = vmatpush1.msra.mxu0 0.0
    %128 = vmatprep.subr.mxu0 0.0
    %129 = vmatpush1.msra.mxu0 0.0
    %130 = vmatprep.subr.mxu0 0.0
    %131 = vmatpush1.msra.mxu0 0.0
    %132 = vmatprep.subr.mxu0 0.0
    %133 = vmatpush1.msra.mxu0 0.0
    %134 = vmatprep.subr.mxu0 0.0
    %135 = vmatpush1.msra.mxu0 0.0
    %136 = vmatprep.subr.mxu0 0.0
    %137 = vmatpush1.msra.mxu0 0.0
    %138 = vmatprep.subr.mxu0 0.0
    %139 = vmatpush1.msra.mxu0 0.0
    %140 = vmatprep.subr.mxu0 0.0
    %141 = vmatpush1.msra.mxu0 0.0
    %142 = vmatprep.subr.mxu0 0.0
    %143 = vmatpush1.msra.mxu0 0.0
    %144 = vmatprep.subr.mxu0 0.0
    %145 = vmatpush1.msra.mxu0 0.0
    %146 = vmatprep.subr.mxu0 0.0
    %147 = vmatpush1.msra.mxu0 0.0
    %148 = vmatprep.subr.mxu0 0.0
    %149 = vmatpush1.msra.mxu0 0.0
    %150 = vmatprep.subr.mxu0 0.0
    %151 = vmatpush1.msra.mxu0 0.0
    %152 = vmatprep.subr.mxu0 0.0
    %153 = vmatpush1.msra.mxu0 0.0
    %154 = vmatprep.subr.mxu0 0.0
    %155 = vmatpush1.msra.mxu0 0.0
    %156 = vmatprep.subr.mxu0 0.0
    %157 = vmatpush1.msra.mxu0 0.0
    %158 = vmatprep.subr.mxu0 0.0
    %159 = vmatpush1.msra.mxu0 0.0
    %160 = vmatprep.subr.mxu0 0.0
    %161 = vmatpush1.msra.mxu0 0.0
    %162 = vmatprep.subr.mxu0 0.0
    %163 = vmatpush1.msra.mxu0 0.0
    %164 = vmatprep.subr.mxu0 0.0
    %165 = vmatpush1.msra.mxu0 0.0
    %166 = vmatprep.subr.mxu0 0.0
    %167 = vmatpush1.msra.mxu0 0.0
    %168 = vmatprep.subr.mxu0 0.0
    %169 = vmatpush1.msra.mxu0 0.0
    %170 = vmatprep.subr.mxu0 0.0
    %171 = vmatpush1.msra.mxu0 0.0
    %172 = vmatprep.subr.mxu0 0.0
    %173 = vmatpush1.msra.mxu0 0.0
    %174 = vmatprep.subr.mxu0 0.0
    %175 = vmatpush1.msra.mxu0 0.0
    %176 = vmatprep.subr.mxu0 0.0
    %177 = vmatpush1.msra.mxu0 0.0
    %178 = vmatprep.mubr.f32.mxu0 0.0
    %179 = vmatmul.mubr.f32.gmra.mrb[0].mxu0 %v112
    %v180 = vpop.f32.mrb[0].mxu0
    %v181 = vadd.f32 %v26, %v180
    %v182 = vpop.f32.mrb[0].mxu0
    %183 = vdwg.mxu0
    %s184 = scalar_lea.vmem [#allocation2], 8
    %185 = vst.msk [vmem:[%s184] sm:$0xff] %vm107, %v181
    // Predicated region
    $region18: #{tpu_custom_call.1} parent=1 // pred_check
      _
    $region19: #{tpu_custom_call.1} parent=1 // pred_check_branch
      %187 = sbr.rel (0) target = $region21
    $region20: #{tpu_custom_call.1} parent=1 // pred_region
      %s189 = ssub.s32 256, 256
      %190 = vsyncadd [#allocation3], %s189
      %s191 = sshll.u32 [#allocation2], 4
      %s192 = int_to_ptr.vmem [resolvable:$true] %s191
      %197 = dma.vmem_to_hbm [thread:$0]  %s192, 256, %s4, [#allocation3], 128, 128, 8
    $region21: #{tpu_custom_call.1} parent=1 // pred_fallthru
      _
    // Predicated region
    $region22: #{tpu_custom_call.1} parent=1 // pred_check
      _
    $region23: #{tpu_custom_call.1} parent=1 // pred_check_branch
      %199 = sbr.rel (0) target = $region25
    $region24: #{tpu_custom_call.1} parent=1 // pred_region
      %200 = dma.done [#allocation3], 256
    $region25: #{tpu_custom_call.1} parent=1 // pred_fallthru
      _
    %201 = vsyncpa [#allocation3], 1

</llo_original>
